<compile_context>
chip_gen: v6e
topology: v6e:2x2x1
jax: 0.10.0
libtpu: 0.0.40
codegen_flags: <defaults>
</compile_context>

<pallas_src>
import functools

import jax
import jax.numpy as jnp
from jax.experimental import pallas as pl
from jax.experimental.pallas import tpu as pltpu


# ---------------------------------------------------------------------------
# Kernel: one grid step handles one lane-dense column tile of the banks.
#   u_ref  : (batch, bit)        bf16  (resident across the grid)
#   y_ref  : (batch, n_class)    bf16  (resident across the grid)
#   Ut_ref : (bit, tile_n)       bf16  lane-dense tile of U^T
#   Yt_ref : (n_class, tile_n)   bf16  lane-dense tile of Y^T
#   out_ref: (1, 1, tile_n)      f32   per-tile partial sum over batch
# ---------------------------------------------------------------------------
def _dbdh_kernel(u_ref, y_ref, Ut_ref, Yt_ref, out_ref):
    u = u_ref[...]
    y = y_ref[...]
    Ut = Ut_ref[...]
    Yt = Yt_ref[...]

    # inner_product = u @ U^T * 0.5  -> (batch, tile_n), natural MXU (M,K)x(K,N)
    ip = jax.lax.dot_general(u, Ut, (((1,), (0,)), ((), ())),
                             preferred_element_type=jnp.float32) * 0.5
    # s = (y @ Y^T > 0)
    syy = jax.lax.dot_general(y, Yt, (((1,), (0,)), ((), ())),
                              preferred_element_type=jnp.float32)
    s = (syy > 0).astype(jnp.float32)

    # log(1 + exp(-|ip|)) + clamp(ip, min=0) - s * ip   (all f32)
    ll = jnp.log1p(jnp.exp(-jnp.abs(ip))) + jnp.maximum(ip, 0.0) - s * ip

    # Partial sum over batch only (sublane reduce); output stays lane-dense and
    # each grid step owns its own block -> grid axis is fully parallel.
    out_ref[...] = jnp.sum(ll, axis=0, keepdims=True)[None]


# ---------------------------------------------------------------------------
# Geometry / persistent state helpers
# ---------------------------------------------------------------------------
def _round_up(x, m):
    return ((x + m - 1) // m) * m


def _bank_geometry(num_train, max_tile_n=8192):
    """Pick (tile_n, padded_n).  tile_n % 128 == 0, padded_n % tile_n == 0,
    and num_tiles >= 2 whenever the bank is big enough (v7x has 2 TCs)."""
    assert max_tile_n >= 128 and max_tile_n % 128 == 0
    padded_min = _round_up(max(num_train, 128), 128)
    if padded_min >= 256:
        tile_n = min(max_tile_n, _round_up((padded_min + 1) // 2, 128))
    else:
        tile_n = padded_min
    padded_n = _round_up(padded_min, tile_n)
    return tile_n, padded_n


def init_dbdh_state(num_train, bit, n_class, *, max_tile_n=8192,
                    bank_dtype=jnp.bfloat16):
    """Zero banks, stored transposed + padded once (mirrors DBDHLoss.__init__)."""
    tile_n, padded_n = _bank_geometry(num_train, max_tile_n)
    U_t = jnp.zeros((bit, padded_n), bank_dtype)
    Y_t = jnp.zeros((n_class, padded_n), bank_dtype)
    return U_t, Y_t, tile_n


# ---------------------------------------------------------------------------
# Forward.  Mirrors DBDHLoss.forward: returns (loss, U_t_new, Y_t_new); the
# bank updates are the module's buffer side effects (donated -> in place).
# ---------------------------------------------------------------------------
@functools.partial(jax.jit, static_argnames=("p", "tile_n"),
                   donate_argnums=(3, 4))
def dbdh_loss_pallas(u, y, ind, U_t, Y_t, num_train, *, alpha, p, tile_n):
    u_c = jnp.clip(u.astype(jnp.float32), -1.0, 1.0)
    y_f = y.astype(jnp.float32)

    # Persistent-state scatter (glue, plain JAX): write new codes / labels as
    # columns of the transposed banks.  Padded columns stay exactly zero.
    U_t = U_t.at[:, ind].set(u_c.T.astype(U_t.dtype))
    Y_t = Y_t.at[:, ind].set(y_f.T.astype(Y_t.dtype))

    batch, bit = u_c.shape
    n_class = y_f.shape[1]
    padded_n = U_t.shape[1]
    assert tile_n % 128 == 0 and padded_n % tile_n == 0
    num_tiles = padded_n // tile_n

    partials = pl.pallas_call(
        _dbdh_kernel,
        out_shape=jax.ShapeDtypeStruct((num_tiles, 1, tile_n), jnp.float32),
        grid_spec=pltpu.PrefetchScalarGridSpec(
            num_scalar_prefetch=0,
            grid=(num_tiles,),
            in_specs=[
                pl.BlockSpec((batch, bit), lambda k: (0, 0)),
                pl.BlockSpec((batch, n_class), lambda k: (0, 0)),
                pl.BlockSpec((bit, tile_n), lambda k: (0, k)),
                pl.BlockSpec((n_class, tile_n), lambda k: (0, k)),
            ],
            out_specs=pl.BlockSpec((1, 1, tile_n), lambda k: (k, 0, 0)),
        ),
        compiler_params=pltpu.CompilerParams(
            dimension_semantics=("parallel",)),
    )(u_c.astype(U_t.dtype), y_f.astype(Y_t.dtype), U_t, Y_t)

    ll_sum = jnp.sum(partials)
    # Zero-padded bank columns contribute exactly log(1 + exp(0)) each.
    n_pad = jnp.asarray(padded_n - num_train, jnp.float32)
    ll_sum = ll_sum - jnp.float32(batch) * n_pad * jnp.log(jnp.float32(2.0))
    ll_mean = ll_sum / (jnp.float32(batch) * jnp.asarray(num_train, jnp.float32))

    um = jnp.mean(u_c, axis=1)                       # f32, exact vs reference
    qv = jnp.abs(um) if p == 1 else um * um
    loss = ll_mean + jnp.asarray(alpha, jnp.float32) * jnp.mean(qv)
    return loss, U_t, Y_t


# ---------------------------------------------------------------------------
# Pure-JAX (f32) reference of the PyTorch forward (for testing).
# ---------------------------------------------------------------------------
def dbdh_loss_ref(u, y, ind, U, Y, *, alpha, p):
    u = jnp.clip(u.astype(jnp.float32), -1.0, 1.0)
    y = y.astype(jnp.float32)
    U = U.at[ind, :].set(u)
    Y = Y.at[ind, :].set(y)
    s = (y @ Y.T > 0).astype(jnp.float32)
    ip = u @ U.T * 0.5
    ll = jnp.log1p(jnp.exp(-jnp.abs(ip))) + jnp.maximum(ip, 0.0) - s * ip
    ll = ll.mean()
    um = u.mean(axis=1)
    q = alpha * (jnp.abs(um).mean() if p == 1 else (um ** 2).mean())
    return ll + q


if __name__ == "__main__":
    def run_case(num_train, batch=8, bit=32, n_class=16, alpha=0.1, p=2):
        key = jax.random.fold_in(jax.random.PRNGKey(0), num_train)
        ku, ky, ki = jax.random.split(key, 3)
        u = jax.random.normal(ku, (batch, bit), dtype=jnp.float32) * 1.5
        labels = jax.random.randint(ky, (batch,), 0, n_class)
        y = jax.nn.one_hot(labels, n_class, dtype=jnp.float32)
        ind = jax.random.permutation(ki, num_train)[:batch].astype(jnp.int32)

        # Persistent state (zeros, as in __init__), transposed + padded once.
        U_t, Y_t, tile_n = init_dbdh_state(num_train, bit, n_class)

        loss, U_t, Y_t = dbdh_loss_pallas(u, y, ind, U_t, Y_t, num_train,
                                          alpha=alpha, p=p, tile_n=tile_n)
        loss = jax.block_until_ready(loss)

        loss_ref = dbdh_loss_ref(u, y, ind,
                                 jnp.zeros((num_train, bit), jnp.float32),
                                 jnp.zeros((num_train, n_class), jnp.float32),
                                 alpha=alpha, p=p)
        assert jnp.allclose(loss, loss_ref, rtol=2e-2, atol=2e-3), \
            (num_train, float(loss), float(loss_ref))

    run_case(1024)          # aligned bank: two tiles of 512 (both TCs on v7x)
    run_case(300, p=1)      # ragged bank: padded to 512 + analytic correction
    print("KERNEL_OK")
</pallas_src>

<mosaic_0001>
module attributes {stable_mosaic.version = 11 : i64} {
  func.func @_dbdh_kernel(%arg0: i32, %arg1: memref<8x32xbf16, #tpu.memory_space<vmem>>, %arg2: memref<8x16xbf16, #tpu.memory_space<vmem>>, %arg3: memref<32x512xbf16, #tpu.memory_space<vmem>>, %arg4: memref<16x512xbf16, #tpu.memory_space<vmem>>, %arg5: memref<1x1x512xf32, #tpu.memory_space<vmem>>) attributes {dimension_semantics = [#tpu.dimension_semantics<parallel>], iteration_bounds = array<i64: 2>, scalar_prefetch = 0 : i64, scratch_operands = 0 : i64, tpu.core_type = #tpu.core_type<tc>, window_params = [{pipeline_mode = #tpu.pipeline_mode<synchronous>, transform_indices = @transform_0, window_bounds = array<i64: 8, 32>}, {pipeline_mode = #tpu.pipeline_mode<synchronous>, transform_indices = @transform_1, window_bounds = array<i64: 8, 16>}, {transform_indices = @transform_2, window_bounds = array<i64: 32, 512>}, {transform_indices = @transform_3, window_bounds = array<i64: 16, 512>}, {transform_indices = @transform_4, window_bounds = array<i64: 1, 1, 512>}]} {
    %c0 = arith.constant 0 : index
    %c0_0 = arith.constant 0 : index
    %0 = vector.load %arg1[%c0, %c0_0] : memref<8x32xbf16, #tpu.memory_space<vmem>>, vector<8x32xbf16>
    %c0_1 = arith.constant 0 : index
    %c0_2 = arith.constant 0 : index
    %1 = vector.load %arg2[%c0_1, %c0_2] : memref<8x16xbf16, #tpu.memory_space<vmem>>, vector<8x16xbf16>
    %c0_3 = arith.constant 0 : index
    %c0_4 = arith.constant 0 : index
    %2 = vector.load %arg3[%c0_3, %c0_4] : memref<32x512xbf16, #tpu.memory_space<vmem>>, vector<32x512xbf16>
    %c0_5 = arith.constant 0 : index
    %c0_6 = arith.constant 0 : index
    %3 = vector.load %arg4[%c0_5, %c0_6] : memref<16x512xbf16, #tpu.memory_space<vmem>>, vector<16x512xbf16>
    %cst = arith.constant dense<0.000000e+00> : vector<8x512xf32>
    %4 = tpu.matmul %0, %2, %cst {dimension_numbers = #tpu.dot_dimension_numbers<[1], [0], [0], [1], [0, 0, 1, 1], [], []>} : vector<8x32xbf16>, vector<32x512xbf16>, vector<8x512xf32> -> vector<8x512xf32>
    %cst_7 = arith.constant 5.000000e-01 : f32
    %5 = vector.broadcast %cst_7 : f32 to vector<8x512xf32>
    %6 = arith.mulf %4, %5 : vector<8x512xf32>
    %cst_8 = arith.constant dense<0.000000e+00> : vector<8x512xf32>
    %7 = tpu.matmul %1, %3, %cst_8 {dimension_numbers = #tpu.dot_dimension_numbers<[1], [0], [0], [1], [0, 0, 1, 1], [], []>} : vector<8x16xbf16>, vector<16x512xbf16>, vector<8x512xf32> -> vector<8x512xf32>
    %cst_9 = arith.constant 0.000000e+00 : f32
    %8 = vector.broadcast %cst_9 : f32 to vector<8x512xf32>
    %9 = arith.cmpf ogt, %7, %8 : vector<8x512xf32>
    %10 = arith.extui %9 : vector<8x512xi1> to vector<8x512xi32>
    %11 = arith.sitofp %10 : vector<8x512xi32> to vector<8x512xf32>
    %12 = math.absf %6 : vector<8x512xf32>
    %cst_10 = arith.constant 0.000000e+00 : f32
    %13 = vector.broadcast %cst_10 : f32 to vector<8x512xf32>
    %14 = arith.subf %13, %12 : vector<8x512xf32>
    %15 = math.exp %14 : vector<8x512xf32>
    %16 = math.log1p %15 : vector<8x512xf32>
    %cst_11 = arith.constant 0.000000e+00 : f32
    %17 = vector.broadcast %cst_11 : f32 to vector<8x512xf32>
    %18 = arith.maximumf %6, %17 : vector<8x512xf32>
    %19 = arith.addf %16, %18 : vector<8x512xf32>
    %20 = arith.mulf %11, %6 : vector<8x512xf32>
    %21 = arith.subf %19, %20 : vector<8x512xf32>
    %cst_12 = arith.constant dense<0.000000e+00> : vector<512xf32>
    %22 = vector.multi_reduction <add>, %21, %cst_12 [0] : vector<8x512xf32> to vector<512xf32>
    %23 = vector.shape_cast %22 : vector<512xf32> to vector<1x512xf32>
    %24 = vector.shape_cast %23 : vector<1x512xf32> to vector<1x1x512xf32>
    %c0_13 = arith.constant 0 : index
    %c0_14 = arith.constant 0 : index
    %c0_15 = arith.constant 0 : index
    %25 = vector.load %arg5[%c0_13, %c0_14, %c0_15] : memref<1x1x512xf32, #tpu.memory_space<vmem>>, vector<1x1x512xf32>
    tpu.vector_store %arg5[%c0_13, %c0_14, %c0_15], %24 {strides = array<i32>} : memref<1x1x512xf32, #tpu.memory_space<vmem>>, vector<1x1x512xf32>,
    return
  }
  func.func @transform_0(%arg0: i32) -> (i32, i32) {
    %c0_i32 = arith.constant 0 : i32
    %c0_i32_0 = arith.constant 0 : i32
    %c0_i32_1 = arith.constant 0 : i32
    return %c0_i32, %c0_i32_0 : i32, i32
  }
  func.func @transform_1(%arg0: i32) -> (i32, i32) {
    %c0_i32 = arith.constant 0 : i32
    %c0_i32_0 = arith.constant 0 : i32
    %c0_i32_1 = arith.constant 0 : i32
    return %c0_i32, %c0_i32_0 : i32, i32
  }
  func.func @transform_2(%arg0: i32) -> (i32, i32) {
    %c0_i32 = arith.constant 0 : i32
    %c0_i32_0 = arith.constant 0 : i32
    return %c0_i32, %arg0 : i32, i32
  }
  func.func @transform_3(%arg0: i32) -> (i32, i32) {
    %c0_i32 = arith.constant 0 : i32
    %c0_i32_0 = arith.constant 0 : i32
    return %c0_i32, %arg0 : i32, i32
  }
  func.func @transform_4(%arg0: i32) -> (i32, i32, i32) {
    %c0_i32 = arith.constant 0 : i32
    %c0_i32_0 = arith.constant 0 : i32
    %c0_i32_1 = arith.constant 0 : i32
    return %arg0, %c0_i32, %c0_i32_0 : i32, i32, i32
  }
}

</mosaic_0001>

<llo_original>
// kernel: dbdh_loss_pallas.1
$region0: #{dbdh_loss_pallas.1}
  #allocation0 [shape = 'u32[]', space=smem, size = 0x4, offset = 0x4, fixed_abs, tag = 'smem constant byte address 0x4 - core index']
  #allocation1 [shape = 'u32[144,128]{1,0:T(1,128)}', space=vmem, size = 0x12000, scoped, tag = 'internal scratch']
  %s0 = inlined_call_operand.vmem [shape: bf16[8,32], index: 0, kind: input, shape index: {}]
  %s1 = inlined_call_operand.vmem [shape: bf16[8,16], index: 1, kind: input, shape index: {}]
  %s2 = inlined_call_operand.vmem [shape: bf16[32,1024], index: 2, kind: input, shape index: {}]
  %s3 = inlined_call_operand.vmem [shape: bf16[16,1024], index: 3, kind: input, shape index: {}]
  %s4 = inlined_call_operand.vmem [shape: f32[2,1,512], index: 4, kind: output, shape index: {}]
  %s5 = sld [smem:[#allocation0]]
  $region95: #{dbdh_loss_pallas.1} parent=0
    _
  %s7 = ssub.s32 1, %s5
  %s8 = scalar_select 0, %s7, %s5
  $region1: #{dbdh_loss_pallas.1} parent=0
    #allocation2 [shape = 'u8[65536]{0}', space=vmem, size = 0x10000, scoped, tag = 'input window, operand 2']
    #allocation3 [shape = 'u8[32768]{0}', space=vmem, size = 0x8000, scoped, tag = 'input window, operand 3']
    loop: start=0, step=1, limit=4
    $region2: #{dbdh_loss_pallas.1} parent=1 // loop_pre_header
      _
    $region3: #{dbdh_loss_pallas.1} parent=1 // loop_header
      %s10 = sphi 0, %s14
      %p11 = scmp.ge.s32.totalorder %s10, 4
      %s18 = sphi 0, %s18
      %s20 = sphi 0, %s18
      %s21 = sphi 0, %s20
      %s35 = sphi 0, %s21
      %s39 = sphi 0, %s39
      %s41 = sphi 0, %s39
      %s42 = sphi 0, %s41
      %s56 = sphi 0, %s42
      %s62 = sphi 0, %s64
      %s65 = sphi 0, %s62
      %s66 = sphi 0, %s65
      %s82 = sphi 0, %s66
      %s88 = sphi 0, %s90
      %s91 = sphi 0, %s88
      %s92 = sphi 0, %s91
      %s108 = sphi 0, %s92
      %s114 = sphi 0, %s116
      %s117 = sphi 0, %s114
      %s118 = sphi 0, %s117
      %s134 = sphi 0, %s118
    $region4: #{dbdh_loss_pallas.1} parent=1 // loop_header_branch
      %13 = sbr.rel (%p11) target = $region8
    $region5: #{dbdh_loss_pallas.1} parent=1 // loop_body
      %s15 = ssub.s32 %s10, 1
      %s16 = ssub.s32 %s10, 2
      %s17 = sadd.s32 %s10, 1
      %s19 = sadd.s32 %s18, 1
      %p22 = scmp.eq.s32.totalorder %s10, 1
      %p23 = scmp.ne.s32.totalorder %s18, %s20
      %p24 = scmp.eq.s32.totalorder %s10, 0
      %p25 = por %p23, %p24
      %p26 = scmp.ne.s32.totalorder %s18, %s20
      %p27 = scmp.eq.s32.totalorder %s15, 1
      %p28 = por %p26, %p27
      %p29 = scmp.ne.s32.totalorder %s20, %s21
      %p30 = scmp.eq.s32.totalorder %s15, 0
      %p31 = por %p29, %p30
      %p32 = scmp.ne.s32.totalorder %s20, %s21
      %p33 = scmp.eq.s32.totalorder %s16, 1
      %p34 = por %p32, %p33
      %p36 = scmp.ne.s32.totalorder %s21, %s35
      %p37 = scmp.eq.s32.totalorder %s16, 0
      %p38 = por %p36, %p37
      %s40 = sadd.s32 %s39, 1
      %p43 = scmp.eq.s32.totalorder %s10, 1
      %p44 = scmp.ne.s32.totalorder %s39, %s41
      %p45 = scmp.eq.s32.totalorder %s10, 0
      %p46 = por %p44, %p45
      %p47 = scmp.ne.s32.totalorder %s39, %s41
      %p48 = scmp.eq.s32.totalorder %s15, 1
      %p49 = por %p47, %p48
      %p50 = scmp.ne.s32.totalorder %s41, %s42
      %p51 = scmp.eq.s32.totalorder %s15, 0
      %p52 = por %p50, %p51
      %p53 = scmp.ne.s32.totalorder %s41, %s42
      %p54 = scmp.eq.s32.totalorder %s16, 1
      %p55 = por %p53, %p54
      %p57 = scmp.ne.s32.totalorder %s42, %s56
      %p58 = scmp.eq.s32.totalorder %s16, 0
      %p59 = por %p57, %p58
      %s60 = ssub.s32 %s10, %s17
      %p61 = scmp.eq.s32.totalorder %s60, 0
      %s63 = sadd.s32 %s62, 1
      %s64 = scalar_select %p61, %s62, %s63
      %p67 = pneg %p61
      %p68 = scmp.eq.s32.totalorder %s10, 1
      %p69 = por %p67, %p68
      %p70 = scmp.ne.s32.totalorder %s62, %s65
      %p71 = scmp.eq.s32.totalorder %s10, 0
      %p72 = por %p70, %p71
      %p73 = scmp.ne.s32.totalorder %s62, %s65
      %p74 = scmp.eq.s32.totalorder %s15, 1
      %p75 = por %p73, %p74
      %p76 = scmp.ne.s32.totalorder %s65, %s66
      %p77 = scmp.eq.s32.totalorder %s15, 0
      %p78 = por %p76, %p77
      %p79 = scmp.ne.s32.totalorder %s65, %s66
      %p80 = scmp.eq.s32.totalorder %s16, 1
      %p81 = por %p79, %p80
      %p83 = scmp.ne.s32.totalorder %s66, %s82
      %p84 = scmp.eq.s32.totalorder %s16, 0
      %p85 = por %p83, %p84
      %s86 = ssub.s32 %s10, %s17
      %p87 = scmp.eq.s32.totalorder %s86, 0
      %s89 = sadd.s32 %s88, 1
      %s90 = scalar_select %p87, %s88, %s89
      %p93 = pneg %p87
      %p94 = scmp.eq.s32.totalorder %s10, 1
      %p95 = por %p93, %p94
      %p96 = scmp.ne.s32.totalorder %s88, %s91
      %p97 = scmp.eq.s32.totalorder %s10, 0
      %p98 = por %p96, %p97
      %p99 = scmp.ne.s32.totalorder %s88, %s91
      %p100 = scmp.eq.s32.totalorder %s15, 1
      %p101 = por %p99, %p100
      %p102 = scmp.ne.s32.totalorder %s91, %s92
      %p103 = scmp.eq.s32.totalorder %s15, 0
      %p104 = por %p102, %p103
      %p105 = scmp.ne.s32.totalorder %s91, %s92
      %p106 = scmp.eq.s32.totalorder %s16, 1
      %p107 = por %p105, %p106
      %p109 = scmp.ne.s32.totalorder %s92, %s108
      %p110 = scmp.eq.s32.totalorder %s16, 0
      %p111 = por %p109, %p110
      %s112 = ssub.s32 %s10, %s17
      %p113 = scmp.eq.s32.totalorder %s112, 0
      %s115 = sadd.s32 %s114, 1
      %s116 = scalar_select %p113, %s114, %s115
      %p119 = pneg %p113
      %p120 = scmp.eq.s32.totalorder %s10, 1
      %p121 = por %p119, %p120
      %p122 = scmp.ne.s32.totalorder %s114, %s117
      %p123 = scmp.eq.s32.totalorder %s10, 0
      %p124 = por %p122, %p123
      %p125 = scmp.ne.s32.totalorder %s114, %s117
      %p126 = scmp.eq.s32.totalorder %s15, 1
      %p127 = por %p125, %p126
      %p128 = scmp.ne.s32.totalorder %s117, %s118
      %p129 = scmp.eq.s32.totalorder %s15, 0
      %p130 = por %p128, %p129
      %p131 = scmp.ne.s32.totalorder %s117, %s118
      %p132 = scmp.eq.s32.totalorder %s16, 1
      %p133 = por %p131, %p132
      %p135 = scmp.ne.s32.totalorder %s118, %s134
      %p136 = scmp.eq.s32.totalorder %s16, 0
      %p137 = por %p135, %p136
      %p138 = scmp.le.s32.totalorder 1, %s10
      %p139 = scmp.lt.s32.totalorder %s10, 3
      %p140 = pnand %p138, %p139
      %p141 = pneg %p140
      // Predicated region
      $region9: #{dbdh_loss_pallas.1} parent=5 // pred_check
        _
      $region10: #{dbdh_loss_pallas.1} parent=5 // pred_check_branch
        %143 = sbr.rel (%p140) target = $region12
      $region11: #{dbdh_loss_pallas.1} parent=5 // pred_region
        %s144 = ssub.s32 %s10, 1
        // Predicated region
        $region13: #{dbdh_loss_pallas.1} parent=11 // pred_check
          %p145 = pneg %p31
        $region14: #{dbdh_loss_pallas.1} parent=11 // pred_check_branch
          %147 = sbr.rel (%p145) target = $region16
        $region15: #{dbdh_loss_pallas.1} parent=11 // pred_region
          _
        $region16: #{dbdh_loss_pallas.1} parent=11 // pred_fallthru
          _
        // Predicated region
        $region17: #{dbdh_loss_pallas.1} parent=11 // pred_check
          %p148 = pneg %p52
        $region18: #{dbdh_loss_pallas.1} parent=11 // pred_check_branch
          %150 = sbr.rel (%p148) target = $region20
        $region19: #{dbdh_loss_pallas.1} parent=11 // pred_region
          _
        $region20: #{dbdh_loss_pallas.1} parent=11 // pred_fallthru
          _
      $region12: #{dbdh_loss_pallas.1} parent=5 // pred_fallthru
        _
      %p151 = scmp.lt.s32.totalorder %s10, 2
      // Predicated region
      $region21: #{dbdh_loss_pallas.1} parent=5 // pred_check
        %p152 = pneg %p151
      $region22: #{dbdh_loss_pallas.1} parent=5 // pred_check_branch
        %154 = sbr.rel (%p152) target = $region24
      $region23: #{dbdh_loss_pallas.1} parent=5 // pred_region
        // Predicated region
        $region25: #{dbdh_loss_pallas.1} parent=23 // pred_check
          %p155 = pneg %p72
        $region26: #{dbdh_loss_pallas.1} parent=23 // pred_check_branch
          %157 = sbr.rel (%p155) target = $region28
        $region27: #{dbdh_loss_pallas.1} parent=23 // pred_region
          %s158 = sand.u32 %s62, 1
          %s159 = sand.u32 %s62, 1
          %s160 = smul.addr %s159, 64
          %s161 = scalar_lea.vmem [#allocation2], %s160
          %s162 = smul.u32 4, %s10
          %s163 = smul.addr %s162, 4
          %s164 = scalar_lea.vmem %s2, %s163
          // Predicated region
          $region29: #{dbdh_loss_pallas.1} parent=27 // pred_check
            _
          $region30: #{dbdh_loss_pallas.1} parent=27 // pred_check_branch
            %166 = sbr.rel (0) target = $region32
          $region31: #{dbdh_loss_pallas.1} parent=27 // pred_region
            // Predicated region
            $region33: #{dbdh_loss_pallas.1} parent=31 // pred_check
              _
            $region34: #{dbdh_loss_pallas.1} parent=31 // pred_check_branch
              %168 = sbr.rel (0) target = $region36
            $region35: #{dbdh_loss_pallas.1} parent=31 // pred_region
              loop: start=0, step=1, limit=1
              $region37: #{dbdh_loss_pallas.1} parent=35 // loop_pre_header
                _
              $region38: #{dbdh_loss_pallas.1} parent=35 // loop_header
                %s170 = sphi 0, %s174
                %p171 = scmp.ge.s32.totalorder %s170, 1
                %s175 = sphi %s164, %s164
                %s176 = sphi %s161, %s161
              $region39: #{dbdh_loss_pallas.1} parent=35 // loop_header_branch
                %173 = sbr.rel (%p171) target = $region43
              $region40: #{dbdh_loss_pallas.1} parent=35 // loop_body
                %v177 = vld [vmem:[%s175] sm:$0xff]
                %178 = vst [vmem:[%s176] sm:$0xff] %v177
                %v179 = vld [vmem:[%s175 + $0x8] sm:$0xff]
                %180 = vst [vmem:[%s176 + $0x8] sm:$0xff] %v179
                %v181 = vld [vmem:[%s175 + $0x20] sm:$0xff]
                %182 = vst [vmem:[%s176 + $0x10] sm:$0xff] %v181
                %v183 = vld [vmem:[%s175 + $0x28] sm:$0xff]
                %184 = vst [vmem:[%s176 + $0x18] sm:$0xff] %v183
                %v185 = vld [vmem:[%s175 + $0x40] sm:$0xff]
                %186 = vst [vmem:[%s176 + $0x20] sm:$0xff] %v185
                %v187 = vld [vmem:[%s175 + $0x48] sm:$0xff]
                %188 = vst [vmem:[%s176 + $0x28] sm:$0xff] %v187
                %v189 = vld [vmem:[%s175 + $0x60] sm:$0xff]
                %190 = vst [vmem:[%s176 + $0x30] sm:$0xff] %v189
                %v191 = vld [vmem:[%s175 + $0x68] sm:$0xff]
                %192 = vst [vmem:[%s176 + $0x38] sm:$0xff] %v191
              $region41: #{dbdh_loss_pallas.1} parent=35 // loop_footer
                %s174 = sadd.s32 1, %s170
              $region42: #{dbdh_loss_pallas.1} parent=35 // loop_footer_branch
                %169 = sbr.rel target = $region38
              $region43: #{dbdh_loss_pallas.1} parent=35 // loop_exit
                _
            $region36: #{dbdh_loss_pallas.1} parent=31 // pred_fallthru
              _
            // Predicated region
            $region44: #{dbdh_loss_pallas.1} parent=31 // pred_check
              _
            $region45: #{dbdh_loss_pallas.1} parent=31 // pred_check_branch
              %194 = sbr.rel target = $region47
            $region46: #{dbdh_loss_pallas.1} parent=31 // pred_region
              _
            $region47: #{dbdh_loss_pallas.1} parent=31 // pred_fallthru
              _
          $region32: #{dbdh_loss_pallas.1} parent=27 // pred_fallthru
            _
          %195 = vnop
        $region28: #{dbdh_loss_pallas.1} parent=23 // pred_fallthru
          _
        // Predicated region
        $region48: #{dbdh_loss_pallas.1} parent=23 // pred_check
          %p196 = pneg %p98
        $region49: #{dbdh_loss_pallas.1} parent=23 // pred_check_branch
          %198 = sbr.rel (%p196) target = $region51
        $region50: #{dbdh_loss_pallas.1} parent=23 // pred_region
          %s199 = sand.u32 %s88, 1
          %s200 = sand.u32 %s88, 1
          %s201 = smul.addr %s200, 32
          %s202 = scalar_lea.vmem [#allocation3], %s201
          %s203 = smul.u32 4, %s10
          %s204 = smul.addr %s203, 4
          %s205 = scalar_lea.vmem %s3, %s204
          // Predicated region
          $region52: #{dbdh_loss_pallas.1} parent=50 // pred_check
            _
          $region53: #{dbdh_loss_pallas.1} parent=50 // pred_check_branch
            %207 = sbr.rel (0) target = $region55
          $region54: #{dbdh_loss_pallas.1} parent=50 // pred_region
            // Predicated region
            $region56: #{dbdh_loss_pallas.1} parent=54 // pred_check
              _
            $region57: #{dbdh_loss_pallas.1} parent=54 // pred_check_branch
              %209 = sbr.rel (0) target = $region59
            $region58: #{dbdh_loss_pallas.1} parent=54 // pred_region
              loop: start=0, step=1, limit=1
              $region60: #{dbdh_loss_pallas.1} parent=58 // loop_pre_header
                _
              $region61: #{dbdh_loss_pallas.1} parent=58 // loop_header
                %s211 = sphi 0, %s215
                %p212 = scmp.ge.s32.totalorder %s211, 1
                %s216 = sphi %s205, %s205
                %s217 = sphi %s202, %s202
              $region62: #{dbdh_loss_pallas.1} parent=58 // loop_header_branch
                %214 = sbr.rel (%p212) target = $region66
              $region63: #{dbdh_loss_pallas.1} parent=58 // loop_body
                %v218 = vld [vmem:[%s216] sm:$0xff]
                %219 = vst [vmem:[%s217] sm:$0xff] %v218
                %v220 = vld [vmem:[%s216 + $0x8] sm:$0xff]
                %221 = vst [vmem:[%s217 + $0x8] sm:$0xff] %v220
                %v222 = vld [vmem:[%s216 + $0x20] sm:$0xff]
                %223 = vst [vmem:[%s217 + $0x10] sm:$0xff] %v222
                %v224 = vld [vmem:[%s216 + $0x28] sm:$0xff]
                %225 = vst [vmem:[%s217 + $0x18] sm:$0xff] %v224
              $region64: #{dbdh_loss_pallas.1} parent=58 // loop_footer
                %s215 = sadd.s32 1, %s211
              $region65: #{dbdh_loss_pallas.1} parent=58 // loop_footer_branch
                %210 = sbr.rel target = $region61
              $region66: #{dbdh_loss_pallas.1} parent=58 // loop_exit
                _
            $region59: #{dbdh_loss_pallas.1} parent=54 // pred_fallthru
              _
            // Predicated region
            $region67: #{dbdh_loss_pallas.1} parent=54 // pred_check
              _
            $region68: #{dbdh_loss_pallas.1} parent=54 // pred_check_branch
              %227 = sbr.rel target = $region70
            $region69: #{dbdh_loss_pallas.1} parent=54 // pred_region
              _
            $region70: #{dbdh_loss_pallas.1} parent=54 // pred_fallthru
              _
          $region55: #{dbdh_loss_pallas.1} parent=50 // pred_fallthru
            _
          %228 = vnop
        $region51: #{dbdh_loss_pallas.1} parent=23 // pred_fallthru
          _
      $region24: #{dbdh_loss_pallas.1} parent=5 // pred_fallthru
        _
      %p229 = scmp.le.s32.totalorder 1, %s10
      %p230 = scmp.lt.s32.totalorder %s10, 3
      %p231 = pnand %p229, %p230
      %p232 = pneg %p231
      // Predicated region
      $region71: #{dbdh_loss_pallas.1} parent=5 // pred_check
        _
      $region72: #{dbdh_loss_pallas.1} parent=5 // pred_check_branch
        %234 = sbr.rel (%p231) target = $region74
      $region73: #{dbdh_loss_pallas.1} parent=5 // pred_region
        %s235 = ssub.s32 %s10, 1
        %s236 = sand.u32 %s65, 1
        %s237 = sand.u32 %s65, 1
        %s238 = smul.addr %s237, 64
        %s239 = scalar_lea.vmem [#allocation2], %s238
        // Predicated region
        $region75: #{dbdh_loss_pallas.1} parent=73 // pred_check
          %p240 = pneg %p78
        $region76: #{dbdh_loss_pallas.1} parent=73 // pred_check_branch
          %242 = sbr.rel (%p240) target = $region78
        $region77: #{dbdh_loss_pallas.1} parent=73 // pred_region
          _
        $region78: #{dbdh_loss_pallas.1} parent=73 // pred_fallthru
          _
        %s243 = sand.u32 %s91, 1
        %s244 = sand.u32 %s91, 1
        %s245 = smul.addr %s244, 32
        %s246 = scalar_lea.vmem [#allocation3], %s245
        // Predicated region
        $region79: #{dbdh_loss_pallas.1} parent=73 // pred_check
          %p247 = pneg %p104
        $region80: #{dbdh_loss_pallas.1} parent=73 // pred_check_branch
          %249 = sbr.rel (%p247) target = $region82
        $region81: #{dbdh_loss_pallas.1} parent=73 // pred_region
          _
        $region82: #{dbdh_loss_pallas.1} parent=73 // pred_fallthru
          _
        %p250 = pneg %p31
        %p251 = pneg %p28
        %p252 = pneg %p52
        %p253 = pneg %p49
        %s254 = sand.u32 %s65, 1
        %s255 = sand.u32 %s65, 1
        %s256 = smul.addr %s255, 64
        %s257 = scalar_lea.vmem [#allocation2], %s256
        %p258 = pneg %p78
        %p259 = pneg %p75
        %s260 = sand.u32 %s91, 1
        %s261 = sand.u32 %s91, 1
        %s262 = smul.addr %s261, 32
        %s263 = scalar_lea.vmem [#allocation3], %s262
        %p264 = pneg %p104
        %p265 = pneg %p101
        %p266 = pneg %p130
        %p267 = pneg %p127
        %p268 = scmp.lt.s32.totalorder %s15, 1
        %s269 = scalar_select %p268, %s15, 1
        %s270 = smul.addr %s269, 4
        %s271 = scalar_lea.vmem %s4, %s270
        %s272 = smul.u32 4, %s15
        %s273 = smul.u32 4, %s15
        %p274 = scmp.lt.s32.totalorder %s15, 1
        %s275 = scalar_select %p274, %s15, 1
        %s276 = smul.addr %s275, 4
        %s277 = scalar_lea.vmem %s4, %s276
        %v279 = vld [vmem:[%s0] sm:$0xf]
        %v280 = vld [vmem:[%s1] sm:$0xf]
        %v281 = vld [vmem:[%s239] sm:$0xff]
        %v282 = vld [vmem:[%s239 + $0x8] sm:$0xff]
        %v283 = vld [vmem:[%s239 + $0x10] sm:$0xff]
        %v284 = vld [vmem:[%s239 + $0x18] sm:$0xff]
        %v285 = vld [vmem:[%s239 + $0x20] sm:$0xff]
        %v286 = vld [vmem:[%s239 + $0x28] sm:$0xff]
        %v287 = vld [vmem:[%s239 + $0x30] sm:$0xff]
        %v288 = vld [vmem:[%s239 + $0x38] sm:$0xff]
        %v289 = vld [vmem:[%s246] sm:$0xff]
        %v290 = vld [vmem:[%s246 + $0x8] sm:$0xff]
        %v291 = vld [vmem:[%s246 + $0x10] sm:$0xff]
        %v292 = vld [vmem:[%s246 + $0x18] sm:$0xff]
        %v301 = vunpack.c.l.b16 %v281
        %v302 = vunpack.c.h.b16 %v281
        %v303 = vunpack.c.l.b16 %v282
        %v304 = vunpack.c.h.b16 %v282
        %v305 = vunpack.c.l.b16 %v283
        %v306 = vunpack.c.h.b16 %v283
        %v307 = vunpack.c.l.b16 %v284
        %v308 = vunpack.c.h.b16 %v284
        %v309 = vunpack.c.l.b16 %v285
        %v310 = vunpack.c.h.b16 %v285
        %v311 = vunpack.c.l.b16 %v286
        %v312 = vunpack.c.h.b16 %v286
        %v313 = vunpack.c.l.b16 %v287
        %v314 = vunpack.c.h.b16 %v287
        %v315 = vunpack.c.l.b16 %v288
        %v316 = vunpack.c.h.b16 %v288
        %v317 = vpack.c.b16 %v305, %v301
        %v318 = vpack.c.b16 %v306, %v302
        %v319 = vpack.c.b16 %v307, %v303
        %v320 = vpack.c.b16 %v308, %v304
        %v321 = vpack.c.b16 %v313, %v309
        %v322 = vpack.c.b16 %v314, %v310
        %v323 = vpack.c.b16 %v315, %v311
        %v324 = vpack.c.b16 %v316, %v312
        %vm333 = vcmask 261120
        %v335 = vsel %vm333, %v279, 0
        %337 = vmatprep.subr.bf16.mxu0 0
        %338 = vmatpush1.bf16.msra.mxu0 0
        %339 = vmatprep.subr.bf16.mxu0 0
        %340 = vmatpush1.bf16.msra.mxu0 0
        %341 = vmatprep.subr.bf16.mxu0 0
        %342 = vmatpush1.bf16.msra.mxu0 0
        %343 = vmatprep.subr.bf16.mxu0 0
        %344 = vmatpush1.bf16.msra.mxu0 0
        %345 = vmatprep.subr.bf16.mxu0 0
        %346 = vmatpush1.bf16.msra.mxu0 0
        %347 = vmatprep.subr.bf16.mxu0 0
        %348 = vmatpush1.bf16.msra.mxu0 0
        %349 = vmatprep.subr.bf16.mxu0 %v322
        %350 = vmatpush1.bf16.msra.mxu0 %v321
        %351 = vmatprep.subr.bf16.mxu0 %v318
        %352 = vmatpush1.bf16.msra.mxu0 %v317
        %353 = vmatprep.subr.bf16.mxu0 0
        %354 = vmatpush2.bf16.msra.mxu0 0
        %355 = vmatprep.subr.bf16.mxu0 0
        %356 = vmatpush2.bf16.msra.mxu0 0
        %357 = vmatprep.subr.bf16.mxu0 0
        %358 = vmatpush2.bf16.msra.mxu0 0
        %359 = vmatprep.subr.bf16.mxu0 0
        %360 = vmatpush2.bf16.msra.mxu0 0
        %361 = vmatprep.subr.bf16.mxu0 0
        %362 = vmatpush2.bf16.msra.mxu0 0
        %363 = vmatprep.subr.bf16.mxu0 0
        %364 = vmatpush2.bf16.msra.mxu0 0
        %365 = vmatprep.subr.bf16.mxu0 0
        %366 = vmatpush2.bf16.msra.mxu0 0
        %367 = vmatprep.subr.bf16.mxu0 0
        %368 = vmatpush2.bf16.msra.mxu0 0
        %369 = vmatprep.mubr.bf16.mxu0 0
        %370 = vmatmul.mubr.bf16.gmra.mxu0 %v335
        %v371 = vpop.f32.mrf.mxu0
        %v372 = vadd.f32 0.0, %v371
        %v373 = vpop.f32.mrf.mxu0
        %v374 = vadd.f32 0.0, %v373
        %v375 = vpop.f32.mrf.mxu0
        %v376 = vpop.f32.mrf.mxu0
        %377 = vdwg.mxu0
        %378 = vmatprep.subr.bf16.mxu0 0
        %379 = vmatpush1.bf16.msra.mxu0 0
        %380 = vmatprep.subr.bf16.mxu0 0
        %381 = vmatpush1.bf16.msra.mxu0 0
        %382 = vmatprep.subr.bf16.mxu0 0
        %383 = vmatpush1.bf16.msra.mxu0 0
        %384 = vmatprep.subr.bf16.mxu0 0
        %385 = vmatpush1.bf16.msra.mxu0 0
        %386 = vmatprep.subr.bf16.mxu0 0
        %387 = vmatpush1.bf16.msra.mxu0 0
        %388 = vmatprep.subr.bf16.mxu0 0
        %389 = vmatpush1.bf16.msra.mxu0 0
        %390 = vmatprep.subr.bf16.mxu0 %v324
        %391 = vmatpush1.bf16.msra.mxu0 %v323
        %392 = vmatprep.subr.bf16.mxu0 %v320
        %393 = vmatpush1.bf16.msra.mxu0 %v319
        %394 = vmatprep.subr.bf16.mxu0 0
        %395 = vmatpush2.bf16.msra.mxu0 0
        %396 = vmatprep.subr.bf16.mxu0 0
        %397 = vmatpush2.bf16.msra.mxu0 0
        %398 = vmatprep.subr.bf16.mxu0 0
        %399 = vmatpush2.bf16.msra.mxu0 0
        %400 = vmatprep.subr.bf16.mxu0 0
        %401 = vmatpush2.bf16.msra.mxu0 0
        %402 = vmatprep.subr.bf16.mxu0 0
        %403 = vmatpush2.bf16.msra.mxu0 0
        %404 = vmatprep.subr.bf16.mxu0 0
        %405 = vmatpush2.bf16.msra.mxu0 0
        %406 = vmatprep.subr.bf16.mxu0 0
        %407 = vmatpush2.bf16.msra.mxu0 0
        %408 = vmatprep.subr.bf16.mxu0 0
        %409 = vmatpush2.bf16.msra.mxu0 0
        %410 = vmatprep.mubr.bf16.mxu0 0
        %411 = vmatmul.mubr.bf16.gmra.mxu0 %v335
        %v412 = vpop.f32.mrf.mxu0
        %v413 = vadd.f32 0.0, %v412
        %v414 = vpop.f32.mrf.mxu0
        %v415 = vadd.f32 0.0, %v414
        %v416 = vpop.f32.mrf.mxu0
        %v417 = vpop.f32.mrf.mxu0
        %418 = vdwg.mxu0
        %v419 = vmul.f32 %v372, 0.5
        %v420 = vmul.f32 %v374, 0.5
        %v421 = vmul.f32 %v413, 0.5
        %v422 = vmul.f32 %v415, 0.5
        %v427 = vunpack.c.l.b16 %v289
        %v428 = vunpack.c.h.b16 %v289
        %v429 = vunpack.c.l.b16 %v290
        %v430 = vunpack.c.h.b16 %v290
        %v431 = vunpack.c.l.b16 %v291
        %v432 = vunpack.c.h.b16 %v291
        %v433 = vunpack.c.l.b16 %v292
        %v434 = vunpack.c.h.b16 %v292
        %v435 = vpack.c.b16 %v431, %v427
        %v436 = vpack.c.b16 %v432, %v428
        %v437 = vpack.c.b16 %v433, %v429
        %v438 = vpack.c.b16 %v434, %v430
        %vm443 = vcmask 130048
        %v445 = vsel %vm443, %v280, 0
        %447 = vmatprep.subr.bf16.mxu0 0
        %448 = vmatpush1.bf16.msra.mxu0 0
        %449 = vmatprep.subr.bf16.mxu0 0
        %450 = vmatpush1.bf16.msra.mxu0 0
        %451 = vmatprep.subr.bf16.mxu0 0
        %452 = vmatpush1.bf16.msra.mxu0 0
        %453 = vmatprep.subr.bf16.mxu0 0
        %454 = vmatpush1.bf16.msra.mxu0 0
        %455 = vmatprep.subr.bf16.mxu0 0
        %456 = vmatpush1.bf16.msra.mxu0 0
        %457 = vmatprep.subr.bf16.mxu0 0
        %458 = vmatpush1.bf16.msra.mxu0 0
        %459 = vmatprep.subr.bf16.mxu0 0
        %460 = vmatpush1.bf16.msra.mxu0 0
        %461 = vmatprep.subr.bf16.mxu0 %v436
        %462 = vmatpush1.bf16.msra.mxu0 %v435
        %463 = vmatprep.subr.bf16.mxu0 0
        %464 = vmatpush2.bf16.msra.mxu0 0
        %465 = vmatprep.subr.bf16.mxu0 0
        %466 = vmatpush2.bf16.msra.mxu0 0
        %467 = vmatprep.subr.bf16.mxu0 0
        %468 = vmatpush2.bf16.msra.mxu0 0
        %469 = vmatprep.subr.bf16.mxu0 0
        %470 = vmatpush2.bf16.msra.mxu0 0
        %471 = vmatprep.subr.bf16.mxu0 0
        %472 = vmatpush2.bf16.msra.mxu0 0
        %473 = vmatprep.subr.bf16.mxu0 0
        %474 = vmatpush2.bf16.msra.mxu0 0
        %475 = vmatprep.subr.bf16.mxu0 0
        %476 = vmatpush2.bf16.msra.mxu0 0
        %477 = vmatprep.subr.bf16.mxu0 0
        %478 = vmatpush2.bf16.msra.mxu0 0
        %479 = vmatprep.mubr.bf16.mxu0 0
        %480 = vmatmul.mubr.bf16.gmra.mxu0 %v445
        %v481 = vpop.f32.mrf.mxu0
        %v482 = vadd.f32 0.0, %v481
        %v483 = vpop.f32.mrf.mxu0
        %v484 = vadd.f32 0.0, %v483
        %v485 = vpop.f32.mrf.mxu0
        %v486 = vpop.f32.mrf.mxu0
        %487 = vdwg.mxu0
        %488 = vmatprep.subr.bf16.mxu0 0
        %489 = vmatpush1.bf16.msra.mxu0 0
        %490 = vmatprep.subr.bf16.mxu0 0
        %491 = vmatpush1.bf16.msra.mxu0 0
        %492 = vmatprep.subr.bf16.mxu0 0
        %493 = vmatpush1.bf16.msra.mxu0 0
        %494 = vmatprep.subr.bf16.mxu0 0
        %495 = vmatpush1.bf16.msra.mxu0 0
        %496 = vmatprep.subr.bf16.mxu0 0
        %497 = vmatpush1.bf16.msra.mxu0 0
        %498 = vmatprep.subr.bf16.mxu0 0
        %499 = vmatpush1.bf16.msra.mxu0 0
        %500 = vmatprep.subr.bf16.mxu0 0
        %501 = vmatpush1.bf16.msra.mxu0 0
        %502 = vmatprep.subr.bf16.mxu0 %v438
        %503 = vmatpush1.bf16.msra.mxu0 %v437
        %504 = vmatprep.subr.bf16.mxu0 0
        %505 = vmatpush2.bf16.msra.mxu0 0
        %506 = vmatprep.subr.bf16.mxu0 0
        %507 = vmatpush2.bf16.msra.mxu0 0
        %508 = vmatprep.subr.bf16.mxu0 0
        %509 = vmatpush2.bf16.msra.mxu0 0
        %510 = vmatprep.subr.bf16.mxu0 0
        %511 = vmatpush2.bf16.msra.mxu0 0
        %512 = vmatprep.subr.bf16.mxu0 0
        %513 = vmatpush2.bf16.msra.mxu0 0
        %514 = vmatprep.subr.bf16.mxu0 0
        %515 = vmatpush2.bf16.msra.mxu0 0
        %516 = vmatprep.subr.bf16.mxu0 0
        %517 = vmatpush2.bf16.msra.mxu0 0
        %518 = vmatprep.subr.bf16.mxu0 0
        %519 = vmatpush2.bf16.msra.mxu0 0
        %520 = vmatprep.mubr.bf16.mxu0 0
        %521 = vmatmul.mubr.bf16.gmra.mxu0 %v445
        %v522 = vpop.f32.mrf.mxu0
        %v523 = vadd.f32 0.0, %v522
        %v524 = vpop.f32.mrf.mxu0
        %v525 = vadd.f32 0.0, %v524
        %v526 = vpop.f32.mrf.mxu0
        %v527 = vpop.f32.mrf.mxu0
        %528 = vdwg.mxu0
        %vm529 = vcmp.gt.f32.partialorder %v482, 0.0
        %vm530 = vcmp.gt.f32.partialorder %v484, 0.0
        %vm531 = vcmp.gt.f32.partialorder %v523, 0.0
        %vm532 = vcmp.gt.f32.partialorder %v525, 0.0
        %v533 = vsel %vm529, 1, 0
        %v534 = vsel %vm530, 1, 0
        %v535 = vsel %vm531, 1, 0
        %v536 = vsel %vm532, 1, 0
        %v537 = vcvt.s32.f32 %v533
        %v538 = vcvt.s32.f32 %v534
        %v539 = vcvt.s32.f32 %v535
        %v540 = vcvt.s32.f32 %v536
        %v541 = vand.u32 2147483647, %v419
        %v542 = vand.u32 2147483647, %v420
        %v543 = vand.u32 2147483647, %v421
        %v544 = vand.u32 2147483647, %v422
        %v545 = vsub.f32 0.0, %v541
        %v546 = vsub.f32 0.0, %v542
        %v547 = vsub.f32 0.0, %v543
        %v548 = vsub.f32 0.0, %v544
        %v549 = vmul.f32 %v545, 1.442695
        %v550 = vpow.pop %v549
        %v551 = vmul.f32 %v546, 1.442695
        %v552 = vpow.pop %v551
        %v553 = vmul.f32 %v547, 1.442695
        %v554 = vpow.pop %v553
        %v555 = vmul.f32 %v548, 1.442695
        %v556 = vpow.pop %v555
        %v557 = vadd.f32 %v550, 1.0
        %v558 = vlog2.pop %v557
        %v559 = vmul.f32 %v558, 0.6931472
        %v560 = vmul.f32 -0.5, %v550
        %v561 = vadd.f32 %v560, 1.0
        %v562 = vmul.f32 %v561, %v550
        %v563 = vand.u32 2147483647, %v550
        %vm564 = vcmp.lt.f32.partialorder %v563, 0.0004427343
        %v565 = vsel %vm564, %v562, %v559
        %v566 = vadd.f32 %v552, 1.0
        %v567 = vlog2.pop %v566
        %v568 = vmul.f32 %v567, 0.6931472
        %v569 = vmul.f32 -0.5, %v552
        %v570 = vadd.f32 %v569, 1.0
        %v571 = vmul.f32 %v570, %v552
        %v572 = vand.u32 2147483647, %v552
        %vm573 = vcmp.lt.f32.partialorder %v572, 0.0004427343
        %v574 = vsel %vm573, %v571, %v568
        %v575 = vadd.f32 %v554, 1.0
        %v576 = vlog2.pop %v575
        %v577 = vmul.f32 %v576, 0.6931472
        %v578 = vmul.f32 -0.5, %v554
        %v579 = vadd.f32 %v578, 1.0
        %v580 = vmul.f32 %v579, %v554
        %v581 = vand.u32 2147483647, %v554
        %vm582 = vcmp.lt.f32.partialorder %v581, 0.0004427343
        %v583 = vsel %vm582, %v580, %v577
        %v584 = vadd.f32 %v556, 1.0
        %v585 = vlog2.pop %v584
        %v586 = vmul.f32 %v585, 0.6931472
        %v587 = vmul.f32 -0.5, %v556
        %v588 = vadd.f32 %v587, 1.0
        %v589 = vmul.f32 %v588, %v556
        %v590 = vand.u32 2147483647, %v556
        %vm591 = vcmp.lt.f32.partialorder %v590, 0.0004427343
        %v592 = vsel %vm591, %v589, %v586
        %v593 = vmax.f32 %v419, 0.0
        %v594 = vmax.f32 %v420, 0.0
        %v595 = vmax.f32 %v421, 0.0
        %v596 = vmax.f32 %v422, 0.0
        %v597 = vadd.f32 %v565, %v593
        %v598 = vadd.f32 %v574, %v594
        %v599 = vadd.f32 %v583, %v595
        %v600 = vadd.f32 %v592, %v596
        %v601 = vmul.f32 %v537, %v419
        %v602 = vmul.f32 %v538, %v420
        %v603 = vmul.f32 %v539, %v421
        %v604 = vmul.f32 %v540, %v422
        %v605 = vsub.f32 %v597, %v601
        %v606 = vsub.f32 %v598, %v602
        %v607 = vsub.f32 %v599, %v603
        %v608 = vsub.f32 %v600, %v604
        %v609 = vrot.slane %v605, 4
        %v610 = vadd.f32 %v605, %v609
        %v611 = vrot.slane %v610, 2
        %v612 = vadd.f32 %v610, %v611
        %v613 = vrot.slane %v612, 1
        %v614 = vadd.f32 %v612, %v613
        %v615 = vrot.slane %v606, 4
        %v616 = vadd.f32 %v606, %v615
        %v617 = vrot.slane %v616, 2
        %v618 = vadd.f32 %v616, %v617
        %v619 = vrot.slane %v618, 1
        %v620 = vadd.f32 %v618, %v619
        %v621 = vrot.slane %v607, 4
        %v622 = vadd.f32 %v607, %v621
        %v623 = vrot.slane %v622, 2
        %v624 = vadd.f32 %v622, %v623
        %v625 = vrot.slane %v624, 1
        %v626 = vadd.f32 %v624, %v625
        %v627 = vrot.slane %v608, 4
        %v628 = vadd.f32 %v608, %v627
        %v629 = vrot.slane %v628, 2
        %v630 = vadd.f32 %v628, %v629
        %v631 = vrot.slane %v630, 1
        %v632 = vadd.f32 %v630, %v631
        %v637 = vcombine.low %v614, %v620
        %v638 = vcombine.low %v626, %v632
        %v640 = vunpack.c.l.s4 1966171168
        %v641 = vunpack.c.0.s8 %v640
        %v642 = vlaneseq
        %v643 = vshrl.u32 %v642, 7
        %v644 = vsub.s32 %v641, %v643
        %v645 = vrot.slane %v637, %v644
        %v647 = vunpack.c.l.s4 1966171168
        %v648 = vunpack.c.0.s8 %v647
        %v649 = vlaneseq
        %v650 = vshrl.u32 %v649, 7
        %v651 = vsub.s32 %v648, %v650
        %v652 = vrot.slane %v638, %v651
        %v653 = vcombine.low %v645, %v652
        %v655 = vunpack.c.l.s4 1966171168
        %v656 = vunpack.c.0.s8 %v655
        %v657 = vlaneseq
        %v658 = vshrl.u32 %v657, 7
        %v659 = vsub.s32 %v656, %v658
        %v660 = vrot.slane %v653, %v659
        %v662 = vlaneseq
        %vm663 = vcmp.ge.s32.totalorder %v662, 0
        %vm664 = vcmp.lt.s32.totalorder %v662, 512
        %vm665 = vmand %vm663, %vm664
        %666 = vst.msk [vmem:[%s277] sm:$0xf] %vm665, %v660
        %p667 = scmp.lt.s32.totalorder %s15, 1
        %s668 = scalar_select %p667, %s15, 1
        %s669 = smul.addr %s668, 4
        %s670 = scalar_lea.vmem %s4, %s669
        // Predicated region
        $region83: #{dbdh_loss_pallas.1} parent=73 // pred_check
          %p671 = pneg %p127
        $region84: #{dbdh_loss_pallas.1} parent=73 // pred_check_branch
          %673 = sbr.rel (%p671) target = $region86
        $region85: #{dbdh_loss_pallas.1} parent=73 // pred_region
          _
        $region86: #{dbdh_loss_pallas.1} parent=73 // pred_fallthru
          _
      $region74: #{dbdh_loss_pallas.1} parent=5 // pred_fallthru
        _
      %p674 = scmp.le.s32.totalorder 2, %s10
      // Predicated region
      $region87: #{dbdh_loss_pallas.1} parent=5 // pred_check
        %p675 = pneg %p674
      $region88: #{dbdh_loss_pallas.1} parent=5 // pred_check_branch
        %677 = sbr.rel (%p675) target = $region90
      $region89: #{dbdh_loss_pallas.1} parent=5 // pred_region
        %s678 = ssub.s32 %s10, 2
        // Predicated region
        $region91: #{dbdh_loss_pallas.1} parent=89 // pred_check
          %p679 = pneg %p133
        $region92: #{dbdh_loss_pallas.1} parent=89 // pred_check_branch
          %681 = sbr.rel (%p679) target = $region94
        $region93: #{dbdh_loss_pallas.1} parent=89 // pred_region
          %p682 = scmp.lt.s32.totalorder %s16, 1
          %s683 = scalar_select %p682, %s16, 1
          %s684 = smul.addr %s683, 4
          %s685 = scalar_lea.vmem %s4, %s684
        $region94: #{dbdh_loss_pallas.1} parent=89 // pred_fallthru
          _
      $region90: #{dbdh_loss_pallas.1} parent=5 // pred_fallthru
        _
    $region6: #{dbdh_loss_pallas.1} parent=1 // loop_footer
      %s14 = sadd.s32 1, %s10
    $region7: #{dbdh_loss_pallas.1} parent=1 // loop_footer_branch
      %9 = sbr.rel target = $region3
    $region8: #{dbdh_loss_pallas.1} parent=1 // loop_exit
      _

</llo_original>
